<compile_context>
chip_gen: v5e
topology: v5e:2x2
jax: 0.10.0
libtpu: 0.0.40
codegen_flags: <defaults>
</compile_context>

<pallas_src>
import functools

import jax
import jax.numpy as jnp
from jax.experimental import pallas as pl
from jax.experimental.pallas import tpu as pltpu

LANE = 128
TARGET_BLOCK_BYTES = 4 * 1024 * 1024   # 4 MiB per input per block
MAX_SHARDS = 2                         # only used on multi-TensorCore chips (v7x)


def _sublane_packing(dtype):
    # Minimum sublane tile per dtype packing: 8 (f32), 16 (bf16/f16), 32 (int8/fp8).
    itemsize = jnp.dtype(dtype).itemsize
    return max(8, 32 // max(1, itemsize))


def _num_tensorcores():
    """TensorCores per device: 2 on v7x, 1 on v5e/v6e (conservative default 1)."""
    try:
        kind = jax.devices()[0].device_kind.lower()
    except Exception:
        return 1
    return 2 if "v7" in kind else 1


def _charbonnier_sum_kernel(pred_ref, target_ref, out_ref, *, eps, rows,
                            block_rows, blocks_per_shard, n_blocks,
                            sharded, has_partial, has_clamp):
    if sharded:
        i = pl.program_id(1)                       # reduction axis within shard
        logical_block = pl.program_id(0) * blocks_per_shard + i
    else:
        i = pl.program_id(0)
        logical_block = i

    @pl.when(i == 0)
    def _():
        out_ref[...] = jnp.zeros_like(out_ref)

    def _accumulate(masked):
        d = pred_ref[...].astype(jnp.float32) - target_ref[...].astype(jnp.float32)
        val = jnp.sqrt(d * d + jnp.float32(eps))
        if masked:
            # Zero rows beyond the real extent (only the partial tail block).
            row_idx = jax.lax.broadcasted_iota(jnp.int32, (block_rows, LANE), 0)
            val = jnp.where(logical_block * block_rows + row_idx < rows, val,
                            jnp.float32(0.0))
        # Stage the reduction as pure VPU adds into the resident (8, 128) f32
        # output block; the single cross-lane reduce happens in the wrapper.
        out_ref[0] += val.reshape(block_rows // 8, 8, LANE).sum(axis=0)

    if not has_partial and not has_clamp:
        # Steady state: every block is full and in range -> no mask, no branch.
        _accumulate(False)
    else:
        full_limit = n_blocks - 1 if has_partial else n_blocks

        @pl.when(logical_block < full_limit)
        def _():
            _accumulate(False)           # full in-range blocks: unmasked

        if has_partial:
            @pl.when(logical_block == n_blocks - 1)
            def _():
                _accumulate(True)        # single partial tail block: masked
        # logical_block >= n_blocks (clamped duplicates): compute skipped.


def _run_bulk_kernel(p2, t2, rows, block_rows, eps, num_shards):
    n_blocks = pl.cdiv(rows, block_rows)
    bps = pl.cdiv(n_blocks, num_shards)            # blocks per shard
    has_partial = (rows % block_rows) != 0
    has_clamp = num_shards * bps != n_blocks

    block_bytes = block_rows * LANE * jnp.dtype(p2.dtype).itemsize
    # 2 inputs x 2 pipeline buffers + slack for the output block / internals.
    vmem_limit = int(2 * 2 * block_bytes + (4 << 20))

    kernel = functools.partial(
        _charbonnier_sum_kernel, eps=float(eps), rows=rows,
        block_rows=block_rows, blocks_per_shard=bps, n_blocks=n_blocks,
        sharded=num_shards > 1, has_partial=has_partial, has_clamp=has_clamp)

    if num_shards > 1:
        # Clamp so DMAs never target a block past the array; clamped duplicate
        # blocks are skipped in-kernel (logical_block >= n_blocks).
        def in_map(s, i):
            return (jnp.minimum(s * bps + i, n_blocks - 1), 0)
        grid = (num_shards, bps)
        out_map = lambda s, i: (s, 0, 0)
        semantics = (pltpu.CORE_PARALLEL, pltpu.ARBITRARY)
    else:
        def in_map(i):
            return (i, 0)
        grid = (n_blocks,)
        out_map = lambda i: (0, 0, 0)
        semantics = (pltpu.ARBITRARY,)

    return pl.pallas_call(
        kernel,
        out_shape=jax.ShapeDtypeStruct((num_shards, 8, LANE), jnp.float32),
        grid_spec=pltpu.PrefetchScalarGridSpec(
            num_scalar_prefetch=0,
            grid=grid,
            in_specs=[pl.BlockSpec((block_rows, LANE), in_map),
                      pl.BlockSpec((block_rows, LANE), in_map)],
            out_specs=pl.BlockSpec((1, 8, LANE), out_map),
        ),
        compiler_params=pltpu.CompilerParams(
            dimension_semantics=semantics,
            vmem_limit_bytes=vmem_limit),
    )(p2, t2)


def charbonnier_loss(pred, target, weight=None, *, loss_weight=1.0,
                     reduction="mean", eps=1e-12, _block_rows=None):
    """Pallas implementation of CharbonnierLoss.forward (weight=None path).

    pred, target: (N, C, H, W) arrays (any shape works; only element count
    matters). Returns a scalar for 'mean'/'sum'.
    """
    if reduction not in ("mean", "sum"):
        # TODO(synk): 'none' reduction (elementwise output) is a trivial
        # elementwise kernel; only the default scalar-reducing path is here.
        raise NotImplementedError("only 'mean' and 'sum' reductions supported")
    if weight is not None:
        # TODO(synk): elementwise weight (third input, multiply before reduce).
        raise NotImplementedError("elementwise weight not implemented")
    assert pred.shape == target.shape

    total = pred.size
    pred_f = pred.reshape(-1)
    target_f = target.reshape(-1)

    packing = _sublane_packing(pred.dtype)
    align = LANE * packing
    bulk = (total // align) * align              # kernel handles this prefix

    total_sum = jnp.float32(0.0)

    if bulk:
        rows = bulk // LANE                      # multiple of `packing` (>= 8)
        itemsize = jnp.dtype(pred.dtype).itemsize
        default_rows = max(
            packing,
            (TARGET_BLOCK_BYTES // (LANE * itemsize)) // packing * packing)
        block_rows = min(_block_rows or default_rows, rows)
        assert block_rows % 8 == 0

        n_blocks = pl.cdiv(rows, block_rows)
        num_shards = min(MAX_SHARDS, _num_tensorcores(), n_blocks)

        if bulk == total:
            # Pure reshape (no copy).
            p2 = pred_f.reshape(rows, LANE)
            t2 = target_f.reshape(rows, LANE)
        else:
            # TODO(synk): verify this prefix slice fuses into the pallas_call
            # (no materialized HBM copy); if not, fold the ragged tail into the
            # kernel (shifted last block + overlap mask) instead.
            p2 = pred_f[:bulk].reshape(rows, LANE)
            t2 = target_f[:bulk].reshape(rows, LANE)

        if num_shards > 1:
            try:
                partials = _run_bulk_kernel(p2, t2, rows, block_rows, eps,
                                            num_shards)
            except Exception:
                # Fallback: single-shard reduction grid.
                partials = _run_bulk_kernel(p2, t2, rows, block_rows, eps, 1)
        else:
            partials = _run_bulk_kernel(p2, t2, rows, block_rows, eps, 1)
        total_sum = total_sum + jnp.sum(partials)

    if bulk < total:
        # Tiny unaligned tail (< 128*packing elements): plain jnp, avoids a
        # full-tensor pad/copy pass over HBM.
        dt = (pred_f[bulk:].astype(jnp.float32)
              - target_f[bulk:].astype(jnp.float32))
        total_sum = total_sum + jnp.sum(jnp.sqrt(dt * dt + jnp.float32(eps)))

    if reduction == "mean":
        out = total_sum / jnp.float32(total)
    else:  # sum
        out = total_sum
    return jnp.float32(loss_weight) * out


def charbonnier_loss_ref(pred, target, *, loss_weight=1.0, reduction="mean",
                         eps=1e-12):
    val = jnp.sqrt((pred.astype(jnp.float32) - target.astype(jnp.float32)) ** 2
                   + jnp.float32(eps))
    red = jnp.mean(val) if reduction == "mean" else jnp.sum(val)
    return jnp.float32(loss_weight) * red


if __name__ == "__main__":
    key = jax.random.PRNGKey(0)

    # Primary case: NCHW like the PyTorch module, batch=2, channels=4, 16x16.
    k1, k2 = jax.random.split(key)
    pred = jax.random.normal(k1, (2, 4, 16, 16), dtype=jnp.float32)
    target = jax.random.normal(k2, (2, 4, 16, 16), dtype=jnp.float32)
    out = jax.block_until_ready(
        charbonnier_loss(pred, target, loss_weight=1.0, reduction="mean",
                         eps=1e-12))
    ref = charbonnier_loss_ref(pred, target, loss_weight=1.0, eps=1e-12)
    assert jnp.allclose(out, ref, rtol=1e-5, atol=1e-6), (out, ref)

    # Unaligned total: exercises the jnp tail path, plus 'sum' reduction.
    k3, k4 = jax.random.split(k1)
    pred_u = jax.random.normal(k3, (2, 3, 17, 19), dtype=jnp.float32)
    target_u = jax.random.normal(k4, (2, 3, 17, 19), dtype=jnp.float32)
    out_u = jax.block_until_ready(
        charbonnier_loss(pred_u, target_u, loss_weight=0.5, reduction="sum",
                         eps=1e-6))
    ref_u = charbonnier_loss_ref(pred_u, target_u, loss_weight=0.5,
                                 reduction="sum", eps=1e-6)
    assert jnp.allclose(out_u, ref_u, rtol=1e-5, atol=1e-4), (out_u, ref_u)

    # Multi-block / masked-tail path (small block size forced for test).
    k5, k6 = jax.random.split(k2)
    pred_m = jax.random.normal(k5, (1, 4, 40, 128), dtype=jnp.float32)
    target_m = jax.random.normal(k6, (1, 4, 40, 128), dtype=jnp.float32)
    out_m = jax.block_until_ready(
        charbonnier_loss(pred_m, target_m, reduction="mean", eps=1e-12,
                         _block_rows=24))
    ref_m = charbonnier_loss_ref(pred_m, target_m, eps=1e-12)
    assert jnp.allclose(out_m, ref_m, rtol=1e-5, atol=1e-6), (out_m, ref_m)

    print("KERNEL_OK")
</pallas_src>

<mosaic_0001>
module attributes {stable_mosaic.version = 11 : i64} {
  func.func @_charbonnier_sum_kernel(%arg0: i32, %arg1: memref<16x128xf32, #tpu.memory_space<vmem>>, %arg2: memref<16x128xf32, #tpu.memory_space<vmem>>, %arg3: memref<1x8x128xf32, #tpu.memory_space<vmem>>) attributes {dimension_semantics = [#tpu.dimension_semantics<arbitrary>], iteration_bounds = array<i64: 1>, scalar_prefetch = 0 : i64, scratch_operands = 0 : i64, tpu.core_type = #tpu.core_type<tc>, window_params = [{transform_indices = @transform_0, window_bounds = array<i64: 16, 128>}, {transform_indices = @transform_1, window_bounds = array<i64: 16, 128>}, {pipeline_mode = #tpu.pipeline_mode<synchronous>, transform_indices = @transform_2, window_bounds = array<i64: 1, 8, 128>}]} {
    %c0_i32 = arith.constant 0 : i32
    %0 = arith.cmpi eq, %arg0, %c0_i32 : i32
    %1 = arith.extui %0 : i1 to i32
    %c0_i32_0 = arith.constant 0 : i32
    %2 = arith.cmpi ne, %1, %c0_i32_0 : i32
    scf.if %2 {
      %cst_11 = arith.constant 0.000000e+00 : f32
      %18 = vector.broadcast %cst_11 : f32 to vector<1x8x128xf32>
      %c0_12 = arith.constant 0 : index
      %c0_13 = arith.constant 0 : index
      %c0_14 = arith.constant 0 : index
      %19 = vector.load %arg3[%c0_12, %c0_13, %c0_14] : memref<1x8x128xf32, #tpu.memory_space<vmem>>, vector<1x8x128xf32>
      tpu.vector_store %arg3[%c0_12, %c0_13, %c0_14], %18 {strides = array<i32>} : memref<1x8x128xf32, #tpu.memory_space<vmem>>, vector<1x8x128xf32>,
    } else {
    }
    %c0 = arith.constant 0 : index
    %c0_1 = arith.constant 0 : index
    %3 = vector.load %arg1[%c0, %c0_1] : memref<16x128xf32, #tpu.memory_space<vmem>>, vector<16x128xf32>
    %c0_2 = arith.constant 0 : index
    %c0_3 = arith.constant 0 : index
    %4 = vector.load %arg2[%c0_2, %c0_3] : memref<16x128xf32, #tpu.memory_space<vmem>>, vector<16x128xf32>
    %5 = arith.subf %3, %4 : vector<16x128xf32>
    %6 = arith.mulf %5, %5 : vector<16x128xf32>
    %cst = arith.constant 9.99999996E-13 : f32
    %7 = vector.broadcast %cst : f32 to vector<16x128xf32>
    %8 = arith.addf %6, %7 : vector<16x128xf32>
    %9 = math.sqrt %8 : vector<16x128xf32>
    %c0_4 = arith.constant 0 : index
    %c0_5 = arith.constant 0 : index
    %c0_6 = arith.constant 0 : index
    %10 = vector.load %arg3[%c0_4, %c0_5, %c0_6] : memref<1x8x128xf32, #tpu.memory_space<vmem>>, vector<1x8x128xf32>
    %11 = vector.shape_cast %10 : vector<1x8x128xf32> to vector<8x128xf32>
    %12 = vector.shape_cast %9 : vector<16x128xf32> to vector<2x8x128xf32>
    %cst_7 = arith.constant dense<0.000000e+00> : vector<8x128xf32>
    %13 = vector.multi_reduction <add>, %12, %cst_7 [0] : vector<2x8x128xf32> to vector<8x128xf32>
    %14 = arith.addf %11, %13 : vector<8x128xf32>
    %c0_8 = arith.constant 0 : index
    %c0_9 = arith.constant 0 : index
    %c0_10 = arith.constant 0 : index
    %15 = vector.load %arg3[%c0_8, %c0_9, %c0_10] : memref<1x8x128xf32, #tpu.memory_space<vmem>>, vector<1x8x128xf32>
    %16 = vector.shape_cast %15 : vector<1x8x128xf32> to vector<8x128xf32>
    %17 = vector.shape_cast %14 : vector<8x128xf32> to vector<1x8x128xf32>
    tpu.vector_store %arg3[%c0_8, %c0_9, %c0_10], %17 {strides = array<i32>} : memref<1x8x128xf32, #tpu.memory_space<vmem>>, vector<1x8x128xf32>,
    return
  }
  func.func @transform_0(%arg0: i32) -> (i32, i32) {
    %c0_i32 = arith.constant 0 : i32
    %c0_i32_0 = arith.constant 0 : i32
    return %arg0, %c0_i32 : i32, i32
  }
  func.func @transform_1(%arg0: i32) -> (i32, i32) {
    %c0_i32 = arith.constant 0 : i32
    %c0_i32_0 = arith.constant 0 : i32
    return %arg0, %c0_i32 : i32, i32
  }
  func.func @transform_2(%arg0: i32) -> (i32, i32, i32) {
    %c0_i32 = arith.constant 0 : i32
    %c0_i32_0 = arith.constant 0 : i32
    %c0_i32_1 = arith.constant 0 : i32
    %c0_i32_2 = arith.constant 0 : i32
    return %c0_i32, %c0_i32_0, %c0_i32_1 : i32, i32, i32
  }
}

</mosaic_0001>

<llo_original>
// kernel: tpu_custom_call.1
$region0: #{tpu_custom_call.1}
  #allocation0 [shape = 'u32[]', space=smem, size = 0x4, offset = 0x4, fixed_abs, tag = 'smem constant byte address 0x4 - core index']
  #allocation1 [shape = 'u32[72,128]{1,0:T(1,128)}', space=vmem, size = 0x9000, scoped, tag = 'internal scratch']
  %s0 = inlined_call_operand.hbm [shape: f32[16,128], index: 0, kind: input, shape index: {}]
  %s1 = inlined_call_operand.hbm [shape: f32[16,128], index: 1, kind: input, shape index: {}]
  %s2 = inlined_call_operand.hbm [shape: f32[1,8,128], index: 2, kind: output, shape index: {}]
  %s3 = sld [smem:[#allocation0]]
  $region30: #{tpu_custom_call.1} parent=0
    _
  %s5 = ssub.s32 1, %s3
  %s6 = scalar_select 0, %s5, %s3
  $region1: #{tpu_custom_call.1} parent=0
    #allocation2 [shape = 'u8[8192]{0}', space=vmem, size = 0x2000, scoped, tag = 'input window, operand 0, single buffered']
    #allocation3 [shape = 's32[1]{0}', space=sflag, size = 0x4, scoped, tag = 'scoped memory for tpu_custom_call.1']
    #allocation4 [shape = 's32[1]{0}', space=sflag, size = 0x4, scoped, tag = 'scoped memory for tpu_custom_call.1']
    #allocation5 [shape = 'u8[8192]{0}', space=vmem, size = 0x2000, scoped, tag = 'input window, operand 1, single buffered']
    #allocation6 [shape = 's32[1]{0}', space=sflag, size = 0x4, scoped, tag = 'scoped memory for tpu_custom_call.1']
    #allocation7 [shape = 'u8[4096]{0}', space=vmem, size = 0x1000, scoped, tag = 'output window, operand 0, single buffered']
    %7 = vsyncpa [#allocation3], 0
    %8 = vsyncpa [#allocation6], 0
    %9 = vsyncpa [#allocation4], 0
    // Predicated region
    $region2: #{tpu_custom_call.1} parent=1 // pred_check
      _
    $region3: #{tpu_custom_call.1} parent=1 // pred_check_branch
      %11 = sbr.rel (0) target = $region5
    $region4: #{tpu_custom_call.1} parent=1 // pred_region
      %13 = vsyncadd [#allocation3], 0
      %s14 = sshll.u32 %s0, 4
      %s15 = int_to_ptr.hbm [resolvable:$true] %s14
      %s16 = sshll.u32 [#allocation2], 4
      %s17 = int_to_ptr.vmem [resolvable:$true] %s16
      %22 = dma.hbm_to_vmem [thread:$0]  %s15, 256, %s17, [#allocation3], 128, 128, 8
    $region5: #{tpu_custom_call.1} parent=1 // pred_fallthru
      _
    // Predicated region
    $region6: #{tpu_custom_call.1} parent=1 // pred_check
      _
    $region7: #{tpu_custom_call.1} parent=1 // pred_check_branch
      %24 = sbr.rel (0) target = $region9
    $region8: #{tpu_custom_call.1} parent=1 // pred_region
      %26 = vsyncadd [#allocation6], 0
      %s27 = sshll.u32 %s1, 4
      %s28 = int_to_ptr.hbm [resolvable:$true] %s27
      %s29 = sshll.u32 [#allocation5], 4
      %s30 = int_to_ptr.vmem [resolvable:$true] %s29
      %35 = dma.hbm_to_vmem [thread:$0]  %s28, 256, %s30, [#allocation6], 128, 128, 8
    $region9: #{tpu_custom_call.1} parent=1 // pred_fallthru
      _
    // Predicated region
    $region10: #{tpu_custom_call.1} parent=1 // pred_check
      _
    $region11: #{tpu_custom_call.1} parent=1 // pred_check_branch
      %37 = sbr.rel (0) target = $region13
    $region12: #{tpu_custom_call.1} parent=1 // pred_region
      %39 = dma.done [#allocation3], 256
    $region13: #{tpu_custom_call.1} parent=1 // pred_fallthru
      _
    // Predicated region
    $region14: #{tpu_custom_call.1} parent=1 // pred_check
      _
    $region15: #{tpu_custom_call.1} parent=1 // pred_check_branch
      %41 = sbr.rel (0) target = $region17
    $region16: #{tpu_custom_call.1} parent=1 // pred_region
      %43 = dma.done [#allocation6], 256
    $region17: #{tpu_custom_call.1} parent=1 // pred_fallthru
      _
    %p44 = scmp.eq.s32.totalorder 0, 0
    // Predicated region
    $region18: #{tpu_custom_call.1} parent=1 // pred_check
      %p45 = pneg %p44
    $region19: #{tpu_custom_call.1} parent=1 // pred_check_branch
      %47 = sbr.rel (%p45) target = $region21
    $region20: #{tpu_custom_call.1} parent=1 // pred_region
      %48 = vst [vmem:[#allocation7] sm:$0xff] 0.0
    $region21: #{tpu_custom_call.1} parent=1 // pred_fallthru
      _
    %v49 = vld [vmem:[#allocation2] sm:$0xff]
    %v50 = vld [vmem:[#allocation2 + $0x8] sm:$0xff]
    %v51 = vld [vmem:[#allocation5] sm:$0xff]
    %v52 = vld [vmem:[#allocation5 + $0x8] sm:$0xff]
    %v53 = vsub.f32 %v49, %v51
    %v54 = vsub.f32 %v50, %v52
    %v55 = vmul.f32 %v53, %v53
    %v56 = vmul.f32 %v54, %v54
    %v57 = vadd.f32 %v55, 1e-12
    %v58 = vadd.f32 %v56, 1e-12
    %v59 = vrsqrt.pop %v57
    %v60 = vmul.f32 %v59, %v57
    %v61 = vmul.f32 %v60, %v59
    %v62 = vmul.f32 0.5, %v61
    %v63 = vsub.f32 1.5, %v62
    %v64 = vmul.f32 %v59, %v63
    %v65 = vmul.f32 %v57, %v64
    %vm66 = vcmp.eq.f32.partialorder %v57, inf
    %v67 = vsel %vm66, %v57, %v65
    %vm68 = vcmp.eq.f32.partialorder %v57, 0.0
    %v69 = vand.u32 %v57, 2147483648
    %v70 = vsel %vm68, %v69, %v67
    %v71 = vrsqrt.pop %v58
    %v72 = vmul.f32 %v71, %v58
    %v73 = vmul.f32 %v72, %v71
    %v74 = vmul.f32 0.5, %v73
    %v75 = vsub.f32 1.5, %v74
    %v76 = vmul.f32 %v71, %v75
    %v77 = vmul.f32 %v58, %v76
    %vm78 = vcmp.eq.f32.partialorder %v58, inf
    %v79 = vsel %vm78, %v58, %v77
    %vm80 = vcmp.eq.f32.partialorder %v58, 0.0
    %v81 = vand.u32 %v58, 2147483648
    %v82 = vsel %vm80, %v81, %v79
    %v83 = vld [vmem:[#allocation7] sm:$0xff]
    %v84 = vadd.f32 %v70, %v82
    %v85 = vadd.f32 %v83, %v84
    %86 = vst [vmem:[#allocation7] sm:$0xff] %v85
    // Predicated region
    $region22: #{tpu_custom_call.1} parent=1 // pred_check
      _
    $region23: #{tpu_custom_call.1} parent=1 // pred_check_branch
      %88 = sbr.rel (0) target = $region25
    $region24: #{tpu_custom_call.1} parent=1 // pred_region
      %90 = vsyncadd [#allocation4], 0
      %s92 = sshll.u32 [#allocation7], 4
      %s93 = int_to_ptr.vmem [resolvable:$true] %s92
      %s94 = sshll.u32 %s2, 4
      %s95 = int_to_ptr.hbm [resolvable:$true] %s94
      %97 = dma.vmem_to_hbm [thread:$0]  %s93, 128, %s95, [#allocation4]
    $region25: #{tpu_custom_call.1} parent=1 // pred_fallthru
      _
    // Predicated region
    $region26: #{tpu_custom_call.1} parent=1 // pred_check
      _
    $region27: #{tpu_custom_call.1} parent=1 // pred_check_branch
      %99 = sbr.rel (0) target = $region29
    $region28: #{tpu_custom_call.1} parent=1 // pred_region
      %101 = dma.done [#allocation4], 128
    $region29: #{tpu_custom_call.1} parent=1 // pred_fallthru
      _
    %102 = vsyncpa [#allocation3], 1
    %103 = vsyncpa [#allocation6], 1
    %104 = vsyncpa [#allocation4], 1

</llo_original>
